<compile_context>
chip_gen: v7x
topology: tpu7x:2x2x1
jax: 0.10.0
libtpu: 0.0.40
codegen_flags: <defaults>
</compile_context>

<pallas_src>
import jax
import jax.numpy as jnp
from jax.experimental import pallas as pl
from jax.experimental.pallas import tpu as pltpu

# Rows (batch lanes) per grid step.  Large to amortize the ~0.35 us per-step overhead;
# with double buffering this is < 1 MiB of VMEM, safe on v5e/v6e (32 MiB scoped) and
# v7x (64 MiB physical).
_TB_MAX = 8192
# Below this batch size, skip Pallas entirely (launch overhead > work).
_MIN_PALLAS_BATCH = 128


def _round_up(x, m):
    return ((x + m - 1) // m) * m


def ae_decoder_kernel(w1_ref, b1_ref, w2_ref, b2_ref, z_ref, o_ref):
    """One batch tile.

    z_ref : (L, TB)  f32 in VMEM, batch on the 128-lane axis (lane-dense).
    w1_ref: (HID, L) f32 in SMEM   (PyTorch layout: [out, in])
    b1_ref: (HID,)   f32 in SMEM
    w2_ref: (OUT,HID)f32 in SMEM
    b2_ref: (OUT,)   f32 in SMEM
    o_ref : (OUT, TB) f32 in VMEM
    """
    hid = w1_ref.shape[0]          # 5
    out = w2_ref.shape[0]          # 11
    lat = z_ref.shape[0]           # latent_dims

    z = z_ref[...]                 # (L, TB) f32 — single lane-dense load

    # Hidden layer: h[j] = relu(b1[j] + sum_k w1[j,k] * z[k, :])
    # Unrolled VPU scalar*vector FMAs (no MXU push/pop for a <0.2%-utilized tile).
    h = []
    for j in range(hid):
        acc = z[0:1, :] * w1_ref[j, 0]
        for k in range(1, lat):
            acc = acc + z[k:k + 1, :] * w1_ref[j, k]
        h.append(jnp.maximum(acc + b1_ref[j], 0.0))      # (1, TB)

    # Output layer: o[m] = b2[m] + sum_j w2[m,j] * h[j]
    rows = []
    for m in range(out):
        acc = h[0] * w2_ref[m, 0]
        for j in range(1, hid):
            acc = acc + h[j] * w2_ref[m, j]
        rows.append(acc + b2_ref[m])                     # (1, TB)

    # Single contiguous lane-dense store of the whole (OUT, TB) slab
    # (keeps the single vst slot on v5e from becoming the binding unit).
    o_ref[...] = jnp.concatenate(rows, axis=0).astype(o_ref.dtype)


def ae_decoder(z, w1, b1, w2, b2):
    """AEDecoder forward.

    z : (B, L) f32
    w1: (5, L) f32, b1: (5,) f32   (PyTorch nn.Linear(latent, 5) layout)
    w2: (11, 5) f32, b2: (11,) f32 (PyTorch nn.Linear(5, 11) layout)
    returns (B, 11) f32
    """
    B, L = z.shape
    hid = w1.shape[0]
    out_dim = w2.shape[0]

    # Micro-batch fast path: let XLA fuse it; Pallas launch + DMA setup would dominate.
    if B < _MIN_PALLAS_BATCH:
        return jnp.maximum(z @ w1.T + b1, 0.0) @ w2.T + b2

    # Lane-dense plumbing in the wrapper (layout only, no compute hoisting):
    # batch goes on the last (lane) axis, padded to a multiple of the tile width.
    tb = min(_TB_MAX, _round_up(B, 128))
    Bp = _round_up(B, tb)
    zt = jnp.transpose(z)                                # (L, B)
    if Bp != B:
        zt = jnp.pad(zt, ((0, 0), (0, Bp - B)))          # padded lanes are discarded below

    grid = (Bp // tb,)

    out_t = pl.pallas_call(
        ae_decoder_kernel,
        out_shape=jax.ShapeDtypeStruct((out_dim, Bp), jnp.float32),
        grid=grid,
        in_specs=[
            # Tiny weights/biases: whole-array SMEM residents, read as scalars in-kernel.
            pl.BlockSpec(memory_space=pltpu.MemorySpace.SMEM),   # w1 (hid, L)
            pl.BlockSpec(memory_space=pltpu.MemorySpace.SMEM),   # b1 (hid,)
            pl.BlockSpec(memory_space=pltpu.MemorySpace.SMEM),   # w2 (out, hid)
            pl.BlockSpec(memory_space=pltpu.MemorySpace.SMEM),   # b2 (out,)
            # z^T tile: full latent dim x TB batch lanes, pipelined over the grid.
            pl.BlockSpec((L, tb), lambda i: (0, i)),
        ],
        out_specs=pl.BlockSpec((out_dim, tb), lambda i: (0, i)),
        compiler_params=pltpu.CompilerParams(
            # Batch tiles are independent -> v7x shards them across its 2 TensorCores.
            dimension_semantics=("parallel",),
        ),
    )(w1, b1, w2, b2, zt)

    return jnp.transpose(out_t[:, :B])                   # (B, 11)


if __name__ == "__main__":
    latent_dims = 4
    batch = 256          # small, but >=128 so the lane-dense Pallas path is exercised

    key = jax.random.PRNGKey(0)
    k_z, k_w1, k_b1, k_w2, k_b2 = jax.random.split(key, 5)

    # Deterministic synthetic parameters in PyTorch nn.Linear layout (out, in).
    z = jax.random.normal(k_z, (batch, latent_dims), dtype=jnp.float32)
    w1 = jax.random.normal(k_w1, (5, latent_dims), dtype=jnp.float32) * 0.1
    b1 = jax.random.normal(k_b1, (5,), dtype=jnp.float32) * 0.1
    w2 = jax.random.normal(k_w2, (11, 5), dtype=jnp.float32) * 0.1
    b2 = jax.random.normal(k_b2, (11,), dtype=jnp.float32) * 0.1

    # Pallas path.
    out = ae_decoder(z, w1, b1, w2, b2)
    out = jax.block_until_ready(out)

    # Pure-JAX reference (same semantics as the PyTorch forward).
    ref = jnp.maximum(z @ w1.T + b1, 0.0) @ w2.T + b2
    assert out.shape == (batch, 11)
    assert jnp.allclose(out, ref, atol=1e-5, rtol=1e-5)

    # Micro-batch dispatch path (pure-XLA fallback) sanity check.
    z_small = z[:2]
    out_small = jax.block_until_ready(ae_decoder(z_small, w1, b1, w2, b2))
    ref_small = jnp.maximum(z_small @ w1.T + b1, 0.0) @ w2.T + b2
    assert jnp.allclose(out_small, ref_small, atol=1e-5, rtol=1e-5)

    print("KERNEL_OK")
</pallas_src>

<mosaic_0001>
module attributes {stable_mosaic.version = 11 : i64} {
  func.func @ae_decoder_kernel(%arg0: i32, %arg1: memref<5x4xf32, #tpu.memory_space<smem>>, %arg2: memref<5xf32, #tpu.memory_space<smem>>, %arg3: memref<11x5xf32, #tpu.memory_space<smem>>, %arg4: memref<11xf32, #tpu.memory_space<smem>>, %arg5: memref<4x256xf32, #tpu.memory_space<vmem>>, %arg6: memref<11x256xf32, #tpu.memory_space<vmem>>) attributes {dimension_semantics = [#tpu.dimension_semantics<parallel>], iteration_bounds = array<i64: 1>, scalar_prefetch = 0 : i64, scratch_operands = 0 : i64, tpu.core_type = #tpu.core_type<tc>, window_params = [{transform_indices = @transform_0, window_bounds = array<i64: 5, 4>}, {transform_indices = @transform_1, window_bounds = array<i64: 5>}, {transform_indices = @transform_2, window_bounds = array<i64: 11, 5>}, {transform_indices = @transform_3, window_bounds = array<i64: 11>}, {transform_indices = @transform_4, window_bounds = array<i64: 4, 256>}, {transform_indices = @transform_5, window_bounds = array<i64: 11, 256>}]} {
    %c0 = arith.constant 0 : index
    %c0_0 = arith.constant 0 : index
    %0 = vector.load %arg5[%c0, %c0_0] : memref<4x256xf32, #tpu.memory_space<vmem>>, vector<4x256xf32>
    %1 = vector.extract_strided_slice %0 {offsets = [0, 0], sizes = [1, 256], strides = [1, 1]} : vector<4x256xf32> to vector<1x256xf32>
    %c0_1 = arith.constant 0 : index
    %c0_2 = arith.constant 0 : index
    %2 = memref.load %arg1[%c0_1, %c0_2] : memref<5x4xf32, #tpu.memory_space<smem>>
    %3 = vector.broadcast %2 : f32 to vector<1x256xf32>
    %4 = arith.mulf %1, %3 : vector<1x256xf32>
    %5 = vector.extract_strided_slice %0 {offsets = [1, 0], sizes = [1, 256], strides = [1, 1]} : vector<4x256xf32> to vector<1x256xf32>
    %c0_3 = arith.constant 0 : index
    %c1 = arith.constant 1 : index
    %6 = memref.load %arg1[%c0_3, %c1] : memref<5x4xf32, #tpu.memory_space<smem>>
    %7 = vector.broadcast %6 : f32 to vector<1x256xf32>
    %8 = arith.mulf %5, %7 : vector<1x256xf32>
    %9 = arith.addf %4, %8 : vector<1x256xf32>
    %10 = vector.extract_strided_slice %0 {offsets = [2, 0], sizes = [1, 256], strides = [1, 1]} : vector<4x256xf32> to vector<1x256xf32>
    %c0_4 = arith.constant 0 : index
    %c2 = arith.constant 2 : index
    %11 = memref.load %arg1[%c0_4, %c2] : memref<5x4xf32, #tpu.memory_space<smem>>
    %12 = vector.broadcast %11 : f32 to vector<1x256xf32>
    %13 = arith.mulf %10, %12 : vector<1x256xf32>
    %14 = arith.addf %9, %13 : vector<1x256xf32>
    %15 = vector.extract_strided_slice %0 {offsets = [3, 0], sizes = [1, 256], strides = [1, 1]} : vector<4x256xf32> to vector<1x256xf32>
    %c0_5 = arith.constant 0 : index
    %c3 = arith.constant 3 : index
    %16 = memref.load %arg1[%c0_5, %c3] : memref<5x4xf32, #tpu.memory_space<smem>>
    %17 = vector.broadcast %16 : f32 to vector<1x256xf32>
    %18 = arith.mulf %15, %17 : vector<1x256xf32>
    %19 = arith.addf %14, %18 : vector<1x256xf32>
    %c0_6 = arith.constant 0 : index
    %20 = memref.load %arg2[%c0_6] : memref<5xf32, #tpu.memory_space<smem>>
    %21 = vector.broadcast %20 : f32 to vector<1x256xf32>
    %22 = arith.addf %19, %21 : vector<1x256xf32>
    %cst = arith.constant 0.000000e+00 : f32
    %23 = vector.broadcast %cst : f32 to vector<1x256xf32>
    %24 = arith.maximumf %22, %23 : vector<1x256xf32>
    %25 = vector.extract_strided_slice %0 {offsets = [0, 0], sizes = [1, 256], strides = [1, 1]} : vector<4x256xf32> to vector<1x256xf32>
    %c1_7 = arith.constant 1 : index
    %c0_8 = arith.constant 0 : index
    %26 = memref.load %arg1[%c1_7, %c0_8] : memref<5x4xf32, #tpu.memory_space<smem>>
    %27 = vector.broadcast %26 : f32 to vector<1x256xf32>
    %28 = arith.mulf %25, %27 : vector<1x256xf32>
    %29 = vector.extract_strided_slice %0 {offsets = [1, 0], sizes = [1, 256], strides = [1, 1]} : vector<4x256xf32> to vector<1x256xf32>
    %c1_9 = arith.constant 1 : index
    %c1_10 = arith.constant 1 : index
    %30 = memref.load %arg1[%c1_9, %c1_10] : memref<5x4xf32, #tpu.memory_space<smem>>
    %31 = vector.broadcast %30 : f32 to vector<1x256xf32>
    %32 = arith.mulf %29, %31 : vector<1x256xf32>
    %33 = arith.addf %28, %32 : vector<1x256xf32>
    %34 = vector.extract_strided_slice %0 {offsets = [2, 0], sizes = [1, 256], strides = [1, 1]} : vector<4x256xf32> to vector<1x256xf32>
    %c1_11 = arith.constant 1 : index
    %c2_12 = arith.constant 2 : index
    %35 = memref.load %arg1[%c1_11, %c2_12] : memref<5x4xf32, #tpu.memory_space<smem>>
    %36 = vector.broadcast %35 : f32 to vector<1x256xf32>
    %37 = arith.mulf %34, %36 : vector<1x256xf32>
    %38 = arith.addf %33, %37 : vector<1x256xf32>
    %39 = vector.extract_strided_slice %0 {offsets = [3, 0], sizes = [1, 256], strides = [1, 1]} : vector<4x256xf32> to vector<1x256xf32>
    %c1_13 = arith.constant 1 : index
    %c3_14 = arith.constant 3 : index
    %40 = memref.load %arg1[%c1_13, %c3_14] : memref<5x4xf32, #tpu.memory_space<smem>>
    %41 = vector.broadcast %40 : f32 to vector<1x256xf32>
    %42 = arith.mulf %39, %41 : vector<1x256xf32>
    %43 = arith.addf %38, %42 : vector<1x256xf32>
    %c1_15 = arith.constant 1 : index
    %44 = memref.load %arg2[%c1_15] : memref<5xf32, #tpu.memory_space<smem>>
    %45 = vector.broadcast %44 : f32 to vector<1x256xf32>
    %46 = arith.addf %43, %45 : vector<1x256xf32>
    %cst_16 = arith.constant 0.000000e+00 : f32
    %47 = vector.broadcast %cst_16 : f32 to vector<1x256xf32>
    %48 = arith.maximumf %46, %47 : vector<1x256xf32>
    %49 = vector.extract_strided_slice %0 {offsets = [0, 0], sizes = [1, 256], strides = [1, 1]} : vector<4x256xf32> to vector<1x256xf32>
    %c2_17 = arith.constant 2 : index
    %c0_18 = arith.constant 0 : index
    %50 = memref.load %arg1[%c2_17, %c0_18] : memref<5x4xf32, #tpu.memory_space<smem>>
    %51 = vector.broadcast %50 : f32 to vector<1x256xf32>
    %52 = arith.mulf %49, %51 : vector<1x256xf32>
    %53 = vector.extract_strided_slice %0 {offsets = [1, 0], sizes = [1, 256], strides = [1, 1]} : vector<4x256xf32> to vector<1x256xf32>
    %c2_19 = arith.constant 2 : index
    %c1_20 = arith.constant 1 : index
    %54 = memref.load %arg1[%c2_19, %c1_20] : memref<5x4xf32, #tpu.memory_space<smem>>
    %55 = vector.broadcast %54 : f32 to vector<1x256xf32>
    %56 = arith.mulf %53, %55 : vector<1x256xf32>
    %57 = arith.addf %52, %56 : vector<1x256xf32>
    %58 = vector.extract_strided_slice %0 {offsets = [2, 0], sizes = [1, 256], strides = [1, 1]} : vector<4x256xf32> to vector<1x256xf32>
    %c2_21 = arith.constant 2 : index
    %c2_22 = arith.constant 2 : index
    %59 = memref.load %arg1[%c2_21, %c2_22] : memref<5x4xf32, #tpu.memory_space<smem>>
    %60 = vector.broadcast %59 : f32 to vector<1x256xf32>
    %61 = arith.mulf %58, %60 : vector<1x256xf32>
    %62 = arith.addf %57, %61 : vector<1x256xf32>
    %63 = vector.extract_strided_slice %0 {offsets = [3, 0], sizes = [1, 256], strides = [1, 1]} : vector<4x256xf32> to vector<1x256xf32>
    %c2_23 = arith.constant 2 : index
    %c3_24 = arith.constant 3 : index
    %64 = memref.load %arg1[%c2_23, %c3_24] : memref<5x4xf32, #tpu.memory_space<smem>>
    %65 = vector.broadcast %64 : f32 to vector<1x256xf32>
    %66 = arith.mulf %63, %65 : vector<1x256xf32>
    %67 = arith.addf %62, %66 : vector<1x256xf32>
    %c2_25 = arith.constant 2 : index
    %68 = memref.load %arg2[%c2_25] : memref<5xf32, #tpu.memory_space<smem>>
    %69 = vector.broadcast %68 : f32 to vector<1x256xf32>
    %70 = arith.addf %67, %69 : vector<1x256xf32>
    %cst_26 = arith.constant 0.000000e+00 : f32
    %71 = vector.broadcast %cst_26 : f32 to vector<1x256xf32>
    %72 = arith.maximumf %70, %71 : vector<1x256xf32>
    %73 = vector.extract_strided_slice %0 {offsets = [0, 0], sizes = [1, 256], strides = [1, 1]} : vector<4x256xf32> to vector<1x256xf32>
    %c3_27 = arith.constant 3 : index
    %c0_28 = arith.constant 0 : index
    %74 = memref.load %arg1[%c3_27, %c0_28] : memref<5x4xf32, #tpu.memory_space<smem>>
    %75 = vector.broadcast %74 : f32 to vector<1x256xf32>
    %76 = arith.mulf %73, %75 : vector<1x256xf32>
    %77 = vector.extract_strided_slice %0 {offsets = [1, 0], sizes = [1, 256], strides = [1, 1]} : vector<4x256xf32> to vector<1x256xf32>
    %c3_29 = arith.constant 3 : index
    %c1_30 = arith.constant 1 : index
    %78 = memref.load %arg1[%c3_29, %c1_30] : memref<5x4xf32, #tpu.memory_space<smem>>
    %79 = vector.broadcast %78 : f32 to vector<1x256xf32>
    %80 = arith.mulf %77, %79 : vector<1x256xf32>
    %81 = arith.addf %76, %80 : vector<1x256xf32>
    %82 = vector.extract_strided_slice %0 {offsets = [2, 0], sizes = [1, 256], strides = [1, 1]} : vector<4x256xf32> to vector<1x256xf32>
    %c3_31 = arith.constant 3 : index
    %c2_32 = arith.constant 2 : index
    %83 = memref.load %arg1[%c3_31, %c2_32] : memref<5x4xf32, #tpu.memory_space<smem>>
    %84 = vector.broadcast %83 : f32 to vector<1x256xf32>
    %85 = arith.mulf %82, %84 : vector<1x256xf32>
    %86 = arith.addf %81, %85 : vector<1x256xf32>
    %87 = vector.extract_strided_slice %0 {offsets = [3, 0], sizes = [1, 256], strides = [1, 1]} : vector<4x256xf32> to vector<1x256xf32>
    %c3_33 = arith.constant 3 : index
    %c3_34 = arith.constant 3 : index
    %88 = memref.load %arg1[%c3_33, %c3_34] : memref<5x4xf32, #tpu.memory_space<smem>>
    %89 = vector.broadcast %88 : f32 to vector<1x256xf32>
    %90 = arith.mulf %87, %89 : vector<1x256xf32>
    %91 = arith.addf %86, %90 : vector<1x256xf32>
    %c3_35 = arith.constant 3 : index
    %92 = memref.load %arg2[%c3_35] : memref<5xf32, #tpu.memory_space<smem>>
    %93 = vector.broadcast %92 : f32 to vector<1x256xf32>
    %94 = arith.addf %91, %93 : vector<1x256xf32>
    %cst_36 = arith.constant 0.000000e+00 : f32
    %95 = vector.broadcast %cst_36 : f32 to vector<1x256xf32>
    %96 = arith.maximumf %94, %95 : vector<1x256xf32>
    %97 = vector.extract_strided_slice %0 {offsets = [0, 0], sizes = [1, 256], strides = [1, 1]} : vector<4x256xf32> to vector<1x256xf32>
    %c4 = arith.constant 4 : index
    %c0_37 = arith.constant 0 : index
    %98 = memref.load %arg1[%c4, %c0_37] : memref<5x4xf32, #tpu.memory_space<smem>>
    %99 = vector.broadcast %98 : f32 to vector<1x256xf32>
    %100 = arith.mulf %97, %99 : vector<1x256xf32>
    %101 = vector.extract_strided_slice %0 {offsets = [1, 0], sizes = [1, 256], strides = [1, 1]} : vector<4x256xf32> to vector<1x256xf32>
    %c4_38 = arith.constant 4 : index
    %c1_39 = arith.constant 1 : index
    %102 = memref.load %arg1[%c4_38, %c1_39] : memref<5x4xf32, #tpu.memory_space<smem>>
    %103 = vector.broadcast %102 : f32 to vector<1x256xf32>
    %104 = arith.mulf %101, %103 : vector<1x256xf32>
    %105 = arith.addf %100, %104 : vector<1x256xf32>
    %106 = vector.extract_strided_slice %0 {offsets = [2, 0], sizes = [1, 256], strides = [1, 1]} : vector<4x256xf32> to vector<1x256xf32>
    %c4_40 = arith.constant 4 : index
    %c2_41 = arith.constant 2 : index
    %107 = memref.load %arg1[%c4_40, %c2_41] : memref<5x4xf32, #tpu.memory_space<smem>>
    %108 = vector.broadcast %107 : f32 to vector<1x256xf32>
    %109 = arith.mulf %106, %108 : vector<1x256xf32>
    %110 = arith.addf %105, %109 : vector<1x256xf32>
    %111 = vector.extract_strided_slice %0 {offsets = [3, 0], sizes = [1, 256], strides = [1, 1]} : vector<4x256xf32> to vector<1x256xf32>
    %c4_42 = arith.constant 4 : index
    %c3_43 = arith.constant 3 : index
    %112 = memref.load %arg1[%c4_42, %c3_43] : memref<5x4xf32, #tpu.memory_space<smem>>
    %113 = vector.broadcast %112 : f32 to vector<1x256xf32>
    %114 = arith.mulf %111, %113 : vector<1x256xf32>
    %115 = arith.addf %110, %114 : vector<1x256xf32>
    %c4_44 = arith.constant 4 : index
    %116 = memref.load %arg2[%c4_44] : memref<5xf32, #tpu.memory_space<smem>>
    %117 = vector.broadcast %116 : f32 to vector<1x256xf32>
    %118 = arith.addf %115, %117 : vector<1x256xf32>
    %cst_45 = arith.constant 0.000000e+00 : f32
    %119 = vector.broadcast %cst_45 : f32 to vector<1x256xf32>
    %120 = arith.maximumf %118, %119 : vector<1x256xf32>
    %c0_46 = arith.constant 0 : index
    %c0_47 = arith.constant 0 : index
    %121 = memref.load %arg3[%c0_46, %c0_47] : memref<11x5xf32, #tpu.memory_space<smem>>
    %122 = vector.broadcast %121 : f32 to vector<1x256xf32>
    %123 = arith.mulf %24, %122 : vector<1x256xf32>
    %c0_48 = arith.constant 0 : index
    %c1_49 = arith.constant 1 : index
    %124 = memref.load %arg3[%c0_48, %c1_49] : memref<11x5xf32, #tpu.memory_space<smem>>
    %125 = vector.broadcast %124 : f32 to vector<1x256xf32>
    %126 = arith.mulf %48, %125 : vector<1x256xf32>
    %127 = arith.addf %123, %126 : vector<1x256xf32>
    %c0_50 = arith.constant 0 : index
    %c2_51 = arith.constant 2 : index
    %128 = memref.load %arg3[%c0_50, %c2_51] : memref<11x5xf32, #tpu.memory_space<smem>>
    %129 = vector.broadcast %128 : f32 to vector<1x256xf32>
    %130 = arith.mulf %72, %129 : vector<1x256xf32>
    %131 = arith.addf %127, %130 : vector<1x256xf32>
    %c0_52 = arith.constant 0 : index
    %c3_53 = arith.constant 3 : index
    %132 = memref.load %arg3[%c0_52, %c3_53] : memref<11x5xf32, #tpu.memory_space<smem>>
    %133 = vector.broadcast %132 : f32 to vector<1x256xf32>
    %134 = arith.mulf %96, %133 : vector<1x256xf32>
    %135 = arith.addf %131, %134 : vector<1x256xf32>
    %c0_54 = arith.constant 0 : index
    %c4_55 = arith.constant 4 : index
    %136 = memref.load %arg3[%c0_54, %c4_55] : memref<11x5xf32, #tpu.memory_space<smem>>
    %137 = vector.broadcast %136 : f32 to vector<1x256xf32>
    %138 = arith.mulf %120, %137 : vector<1x256xf32>
    %139 = arith.addf %135, %138 : vector<1x256xf32>
    %c0_56 = arith.constant 0 : index
    %140 = memref.load %arg4[%c0_56] : memref<11xf32, #tpu.memory_space<smem>>
    %141 = vector.broadcast %140 : f32 to vector<1x256xf32>
    %142 = arith.addf %139, %141 : vector<1x256xf32>
    %c1_57 = arith.constant 1 : index
    %c0_58 = arith.constant 0 : index
    %143 = memref.load %arg3[%c1_57, %c0_58] : memref<11x5xf32, #tpu.memory_space<smem>>
    %144 = vector.broadcast %143 : f32 to vector<1x256xf32>
    %145 = arith.mulf %24, %144 : vector<1x256xf32>
    %c1_59 = arith.constant 1 : index
    %c1_60 = arith.constant 1 : index
    %146 = memref.load %arg3[%c1_59, %c1_60] : memref<11x5xf32, #tpu.memory_space<smem>>
    %147 = vector.broadcast %146 : f32 to vector<1x256xf32>
    %148 = arith.mulf %48, %147 : vector<1x256xf32>
    %149 = arith.addf %145, %148 : vector<1x256xf32>
    %c1_61 = arith.constant 1 : index
    %c2_62 = arith.constant 2 : index
    %150 = memref.load %arg3[%c1_61, %c2_62] : memref<11x5xf32, #tpu.memory_space<smem>>
    %151 = vector.broadcast %150 : f32 to vector<1x256xf32>
    %152 = arith.mulf %72, %151 : vector<1x256xf32>
    %153 = arith.addf %149, %152 : vector<1x256xf32>
    %c1_63 = arith.constant 1 : index
    %c3_64 = arith.constant 3 : index
    %154 = memref.load %arg3[%c1_63, %c3_64] : memref<11x5xf32, #tpu.memory_space<smem>>
    %155 = vector.broadcast %154 : f32 to vector<1x256xf32>
    %156 = arith.mulf %96, %155 : vector<1x256xf32>
    %157 = arith.addf %153, %156 : vector<1x256xf32>
    %c1_65 = arith.constant 1 : index
    %c4_66 = arith.constant 4 : index
    %158 = memref.load %arg3[%c1_65, %c4_66] : memref<11x5xf32, #tpu.memory_space<smem>>
    %159 = vector.broadcast %158 : f32 to vector<1x256xf32>
    %160 = arith.mulf %120, %159 : vector<1x256xf32>
    %161 = arith.addf %157, %160 : vector<1x256xf32>
    %c1_67 = arith.constant 1 : index
    %162 = memref.load %arg4[%c1_67] : memref<11xf32, #tpu.memory_space<smem>>
    %163 = vector.broadcast %162 : f32 to vector<1x256xf32>
    %164 = arith.addf %161, %163 : vector<1x256xf32>
    %c2_68 = arith.constant 2 : index
    %c0_69 = arith.constant 0 : index
    %165 = memref.load %arg3[%c2_68, %c0_69] : memref<11x5xf32, #tpu.memory_space<smem>>
    %166 = vector.broadcast %165 : f32 to vector<1x256xf32>
    %167 = arith.mulf %24, %166 : vector<1x256xf32>
    %c2_70 = arith.constant 2 : index
    %c1_71 = arith.constant 1 : index
    %168 = memref.load %arg3[%c2_70, %c1_71] : memref<11x5xf32, #tpu.memory_space<smem>>
    %169 = vector.broadcast %168 : f32 to vector<1x256xf32>
    %170 = arith.mulf %48, %169 : vector<1x256xf32>
    %171 = arith.addf %167, %170 : vector<1x256xf32>
    %c2_72 = arith.constant 2 : index
    %c2_73 = arith.constant 2 : index
    %172 = memref.load %arg3[%c2_72, %c2_73] : memref<11x5xf32, #tpu.memory_space<smem>>
    %173 = vector.broadcast %172 : f32 to vector<1x256xf32>
    %174 = arith.mulf %72, %173 : vector<1x256xf32>
    %175 = arith.addf %171, %174 : vector<1x256xf32>
    %c2_74 = arith.constant 2 : index
    %c3_75 = arith.constant 3 : index
    %176 = memref.load %arg3[%c2_74, %c3_75] : memref<11x5xf32, #tpu.memory_space<smem>>
    %177 = vector.broadcast %176 : f32 to vector<1x256xf32>
    %178 = arith.mulf %96, %177 : vector<1x256xf32>
    %179 = arith.addf %175, %178 : vector<1x256xf32>
    %c2_76 = arith.constant 2 : index
    %c4_77 = arith.constant 4 : index
    %180 = memref.load %arg3[%c2_76, %c4_77] : memref<11x5xf32, #tpu.memory_space<smem>>
    %181 = vector.broadcast %180 : f32 to vector<1x256xf32>
    %182 = arith.mulf %120, %181 : vector<1x256xf32>
    %183 = arith.addf %179, %182 : vector<1x256xf32>
    %c2_78 = arith.constant 2 : index
    %184 = memref.load %arg4[%c2_78] : memref<11xf32, #tpu.memory_space<smem>>
    %185 = vector.broadcast %184 : f32 to vector<1x256xf32>
    %186 = arith.addf %183, %185 : vector<1x256xf32>
    %c3_79 = arith.constant 3 : index
    %c0_80 = arith.constant 0 : index
    %187 = memref.load %arg3[%c3_79, %c0_80] : memref<11x5xf32, #tpu.memory_space<smem>>
    %188 = vector.broadcast %187 : f32 to vector<1x256xf32>
    %189 = arith.mulf %24, %188 : vector<1x256xf32>
    %c3_81 = arith.constant 3 : index
    %c1_82 = arith.constant 1 : index
    %190 = memref.load %arg3[%c3_81, %c1_82] : memref<11x5xf32, #tpu.memory_space<smem>>
    %191 = vector.broadcast %190 : f32 to vector<1x256xf32>
    %192 = arith.mulf %48, %191 : vector<1x256xf32>
    %193 = arith.addf %189, %192 : vector<1x256xf32>
    %c3_83 = arith.constant 3 : index
    %c2_84 = arith.constant 2 : index
    %194 = memref.load %arg3[%c3_83, %c2_84] : memref<11x5xf32, #tpu.memory_space<smem>>
    %195 = vector.broadcast %194 : f32 to vector<1x256xf32>
    %196 = arith.mulf %72, %195 : vector<1x256xf32>
    %197 = arith.addf %193, %196 : vector<1x256xf32>
    %c3_85 = arith.constant 3 : index
    %c3_86 = arith.constant 3 : index
    %198 = memref.load %arg3[%c3_85, %c3_86] : memref<11x5xf32, #tpu.memory_space<smem>>
    %199 = vector.broadcast %198 : f32 to vector<1x256xf32>
    %200 = arith.mulf %96, %199 : vector<1x256xf32>
    %201 = arith.addf %197, %200 : vector<1x256xf32>
    %c3_87 = arith.constant 3 : index
    %c4_88 = arith.constant 4 : index
    %202 = memref.load %arg3[%c3_87, %c4_88] : memref<11x5xf32, #tpu.memory_space<smem>>
    %203 = vector.broadcast %202 : f32 to vector<1x256xf32>
    %204 = arith.mulf %120, %203 : vector<1x256xf32>
    %205 = arith.addf %201, %204 : vector<1x256xf32>
    %c3_89 = arith.constant 3 : index
    %206 = memref.load %arg4[%c3_89] : memref<11xf32, #tpu.memory_space<smem>>
    %207 = vector.broadcast %206 : f32 to vector<1x256xf32>
    %208 = arith.addf %205, %207 : vector<1x256xf32>
    %c4_90 = arith.constant 4 : index
    %c0_91 = arith.constant 0 : index
    %209 = memref.load %arg3[%c4_90, %c0_91] : memref<11x5xf32, #tpu.memory_space<smem>>
    %210 = vector.broadcast %209 : f32 to vector<1x256xf32>
    %211 = arith.mulf %24, %210 : vector<1x256xf32>
    %c4_92 = arith.constant 4 : index
    %c1_93 = arith.constant 1 : index
    %212 = memref.load %arg3[%c4_92, %c1_93] : memref<11x5xf32, #tpu.memory_space<smem>>
    %213 = vector.broadcast %212 : f32 to vector<1x256xf32>
    %214 = arith.mulf %48, %213 : vector<1x256xf32>
    %215 = arith.addf %211, %214 : vector<1x256xf32>
    %c4_94 = arith.constant 4 : index
    %c2_95 = arith.constant 2 : index
    %216 = memref.load %arg3[%c4_94, %c2_95] : memref<11x5xf32, #tpu.memory_space<smem>>
    %217 = vector.broadcast %216 : f32 to vector<1x256xf32>
    %218 = arith.mulf %72, %217 : vector<1x256xf32>
    %219 = arith.addf %215, %218 : vector<1x256xf32>
    %c4_96 = arith.constant 4 : index
    %c3_97 = arith.constant 3 : index
    %220 = memref.load %arg3[%c4_96, %c3_97] : memref<11x5xf32, #tpu.memory_space<smem>>
    %221 = vector.broadcast %220 : f32 to vector<1x256xf32>
    %222 = arith.mulf %96, %221 : vector<1x256xf32>
    %223 = arith.addf %219, %222 : vector<1x256xf32>
    %c4_98 = arith.constant 4 : index
    %c4_99 = arith.constant 4 : index
    %224 = memref.load %arg3[%c4_98, %c4_99] : memref<11x5xf32, #tpu.memory_space<smem>>
    %225 = vector.broadcast %224 : f32 to vector<1x256xf32>
    %226 = arith.mulf %120, %225 : vector<1x256xf32>
    %227 = arith.addf %223, %226 : vector<1x256xf32>
    %c4_100 = arith.constant 4 : index
    %228 = memref.load %arg4[%c4_100] : memref<11xf32, #tpu.memory_space<smem>>
    %229 = vector.broadcast %228 : f32 to vector<1x256xf32>
    %230 = arith.addf %227, %229 : vector<1x256xf32>
    %c5 = arith.constant 5 : index
    %c0_101 = arith.constant 0 : index
    %231 = memref.load %arg3[%c5, %c0_101] : memref<11x5xf32, #tpu.memory_space<smem>>
    %232 = vector.broadcast %231 : f32 to vector<1x256xf32>
    %233 = arith.mulf %24, %232 : vector<1x256xf32>
    %c5_102 = arith.constant 5 : index
    %c1_103 = arith.constant 1 : index
    %234 = memref.load %arg3[%c5_102, %c1_103] : memref<11x5xf32, #tpu.memory_space<smem>>
    %235 = vector.broadcast %234 : f32 to vector<1x256xf32>
    %236 = arith.mulf %48, %235 : vector<1x256xf32>
    %237 = arith.addf %233, %236 : vector<1x256xf32>
    %c5_104 = arith.constant 5 : index
    %c2_105 = arith.constant 2 : index
    %238 = memref.load %arg3[%c5_104, %c2_105] : memref<11x5xf32, #tpu.memory_space<smem>>
    %239 = vector.broadcast %238 : f32 to vector<1x256xf32>
    %240 = arith.mulf %72, %239 : vector<1x256xf32>
    %241 = arith.addf %237, %240 : vector<1x256xf32>
    %c5_106 = arith.constant 5 : index
    %c3_107 = arith.constant 3 : index
    %242 = memref.load %arg3[%c5_106, %c3_107] : memref<11x5xf32, #tpu.memory_space<smem>>
    %243 = vector.broadcast %242 : f32 to vector<1x256xf32>
    %244 = arith.mulf %96, %243 : vector<1x256xf32>
    %245 = arith.addf %241, %244 : vector<1x256xf32>
    %c5_108 = arith.constant 5 : index
    %c4_109 = arith.constant 4 : index
    %246 = memref.load %arg3[%c5_108, %c4_109] : memref<11x5xf32, #tpu.memory_space<smem>>
    %247 = vector.broadcast %246 : f32 to vector<1x256xf32>
    %248 = arith.mulf %120, %247 : vector<1x256xf32>
    %249 = arith.addf %245, %248 : vector<1x256xf32>
    %c5_110 = arith.constant 5 : index
    %250 = memref.load %arg4[%c5_110] : memref<11xf32, #tpu.memory_space<smem>>
    %251 = vector.broadcast %250 : f32 to vector<1x256xf32>
    %252 = arith.addf %249, %251 : vector<1x256xf32>
    %c6 = arith.constant 6 : index
    %c0_111 = arith.constant 0 : index
    %253 = memref.load %arg3[%c6, %c0_111] : memref<11x5xf32, #tpu.memory_space<smem>>
    %254 = vector.broadcast %253 : f32 to vector<1x256xf32>
    %255 = arith.mulf %24, %254 : vector<1x256xf32>
    %c6_112 = arith.constant 6 : index
    %c1_113 = arith.constant 1 : index
    %256 = memref.load %arg3[%c6_112, %c1_113] : memref<11x5xf32, #tpu.memory_space<smem>>
    %257 = vector.broadcast %256 : f32 to vector<1x256xf32>
    %258 = arith.mulf %48, %257 : vector<1x256xf32>
    %259 = arith.addf %255, %258 : vector<1x256xf32>
    %c6_114 = arith.constant 6 : index
    %c2_115 = arith.constant 2 : index
    %260 = memref.load %arg3[%c6_114, %c2_115] : memref<11x5xf32, #tpu.memory_space<smem>>
    %261 = vector.broadcast %260 : f32 to vector<1x256xf32>
    %262 = arith.mulf %72, %261 : vector<1x256xf32>
    %263 = arith.addf %259, %262 : vector<1x256xf32>
    %c6_116 = arith.constant 6 : index
    %c3_117 = arith.constant 3 : index
    %264 = memref.load %arg3[%c6_116, %c3_117] : memref<11x5xf32, #tpu.memory_space<smem>>
    %265 = vector.broadcast %264 : f32 to vector<1x256xf32>
    %266 = arith.mulf %96, %265 : vector<1x256xf32>
    %267 = arith.addf %263, %266 : vector<1x256xf32>
    %c6_118 = arith.constant 6 : index
    %c4_119 = arith.constant 4 : index
    %268 = memref.load %arg3[%c6_118, %c4_119] : memref<11x5xf32, #tpu.memory_space<smem>>
    %269 = vector.broadcast %268 : f32 to vector<1x256xf32>
    %270 = arith.mulf %120, %269 : vector<1x256xf32>
    %271 = arith.addf %267, %270 : vector<1x256xf32>
    %c6_120 = arith.constant 6 : index
    %272 = memref.load %arg4[%c6_120] : memref<11xf32, #tpu.memory_space<smem>>
    %273 = vector.broadcast %272 : f32 to vector<1x256xf32>
    %274 = arith.addf %271, %273 : vector<1x256xf32>
    %c7 = arith.constant 7 : index
    %c0_121 = arith.constant 0 : index
    %275 = memref.load %arg3[%c7, %c0_121] : memref<11x5xf32, #tpu.memory_space<smem>>
    %276 = vector.broadcast %275 : f32 to vector<1x256xf32>
    %277 = arith.mulf %24, %276 : vector<1x256xf32>
    %c7_122 = arith.constant 7 : index
    %c1_123 = arith.constant 1 : index
    %278 = memref.load %arg3[%c7_122, %c1_123] : memref<11x5xf32, #tpu.memory_space<smem>>
    %279 = vector.broadcast %278 : f32 to vector<1x256xf32>
    %280 = arith.mulf %48, %279 : vector<1x256xf32>
    %281 = arith.addf %277, %280 : vector<1x256xf32>
    %c7_124 = arith.constant 7 : index
    %c2_125 = arith.constant 2 : index
    %282 = memref.load %arg3[%c7_124, %c2_125] : memref<11x5xf32, #tpu.memory_space<smem>>
    %283 = vector.broadcast %282 : f32 to vector<1x256xf32>
    %284 = arith.mulf %72, %283 : vector<1x256xf32>
    %285 = arith.addf %281, %284 : vector<1x256xf32>
    %c7_126 = arith.constant 7 : index
    %c3_127 = arith.constant 3 : index
    %286 = memref.load %arg3[%c7_126, %c3_127] : memref<11x5xf32, #tpu.memory_space<smem>>
    %287 = vector.broadcast %286 : f32 to vector<1x256xf32>
    %288 = arith.mulf %96, %287 : vector<1x256xf32>
    %289 = arith.addf %285, %288 : vector<1x256xf32>
    %c7_128 = arith.constant 7 : index
    %c4_129 = arith.constant 4 : index
    %290 = memref.load %arg3[%c7_128, %c4_129] : memref<11x5xf32, #tpu.memory_space<smem>>
    %291 = vector.broadcast %290 : f32 to vector<1x256xf32>
    %292 = arith.mulf %120, %291 : vector<1x256xf32>
    %293 = arith.addf %289, %292 : vector<1x256xf32>
    %c7_130 = arith.constant 7 : index
    %294 = memref.load %arg4[%c7_130] : memref<11xf32, #tpu.memory_space<smem>>
    %295 = vector.broadcast %294 : f32 to vector<1x256xf32>
    %296 = arith.addf %293, %295 : vector<1x256xf32>
    %c8 = arith.constant 8 : index
    %c0_131 = arith.constant 0 : index
    %297 = memref.load %arg3[%c8, %c0_131] : memref<11x5xf32, #tpu.memory_space<smem>>
    %298 = vector.broadcast %297 : f32 to vector<1x256xf32>
    %299 = arith.mulf %24, %298 : vector<1x256xf32>
    %c8_132 = arith.constant 8 : index
    %c1_133 = arith.constant 1 : index
    %300 = memref.load %arg3[%c8_132, %c1_133] : memref<11x5xf32, #tpu.memory_space<smem>>
    %301 = vector.broadcast %300 : f32 to vector<1x256xf32>
    %302 = arith.mulf %48, %301 : vector<1x256xf32>
    %303 = arith.addf %299, %302 : vector<1x256xf32>
    %c8_134 = arith.constant 8 : index
    %c2_135 = arith.constant 2 : index
    %304 = memref.load %arg3[%c8_134, %c2_135] : memref<11x5xf32, #tpu.memory_space<smem>>
    %305 = vector.broadcast %304 : f32 to vector<1x256xf32>
    %306 = arith.mulf %72, %305 : vector<1x256xf32>
    %307 = arith.addf %303, %306 : vector<1x256xf32>
    %c8_136 = arith.constant 8 : index
    %c3_137 = arith.constant 3 : index
    %308 = memref.load %arg3[%c8_136, %c3_137] : memref<11x5xf32, #tpu.memory_space<smem>>
    %309 = vector.broadcast %308 : f32 to vector<1x256xf32>
    %310 = arith.mulf %96, %309 : vector<1x256xf32>
    %311 = arith.addf %307, %310 : vector<1x256xf32>
    %c8_138 = arith.constant 8 : index
    %c4_139 = arith.constant 4 : index
    %312 = memref.load %arg3[%c8_138, %c4_139] : memref<11x5xf32, #tpu.memory_space<smem>>
    %313 = vector.broadcast %312 : f32 to vector<1x256xf32>
    %314 = arith.mulf %120, %313 : vector<1x256xf32>
    %315 = arith.addf %311, %314 : vector<1x256xf32>
    %c8_140 = arith.constant 8 : index
    %316 = memref.load %arg4[%c8_140] : memref<11xf32, #tpu.memory_space<smem>>
    %317 = vector.broadcast %316 : f32 to vector<1x256xf32>
    %318 = arith.addf %315, %317 : vector<1x256xf32>
    %c9 = arith.constant 9 : index
    %c0_141 = arith.constant 0 : index
    %319 = memref.load %arg3[%c9, %c0_141] : memref<11x5xf32, #tpu.memory_space<smem>>
    %320 = vector.broadcast %319 : f32 to vector<1x256xf32>
    %321 = arith.mulf %24, %320 : vector<1x256xf32>
    %c9_142 = arith.constant 9 : index
    %c1_143 = arith.constant 1 : index
    %322 = memref.load %arg3[%c9_142, %c1_143] : memref<11x5xf32, #tpu.memory_space<smem>>
    %323 = vector.broadcast %322 : f32 to vector<1x256xf32>
    %324 = arith.mulf %48, %323 : vector<1x256xf32>
    %325 = arith.addf %321, %324 : vector<1x256xf32>
    %c9_144 = arith.constant 9 : index
    %c2_145 = arith.constant 2 : index
    %326 = memref.load %arg3[%c9_144, %c2_145] : memref<11x5xf32, #tpu.memory_space<smem>>
    %327 = vector.broadcast %326 : f32 to vector<1x256xf32>
    %328 = arith.mulf %72, %327 : vector<1x256xf32>
    %329 = arith.addf %325, %328 : vector<1x256xf32>
    %c9_146 = arith.constant 9 : index
    %c3_147 = arith.constant 3 : index
    %330 = memref.load %arg3[%c9_146, %c3_147] : memref<11x5xf32, #tpu.memory_space<smem>>
    %331 = vector.broadcast %330 : f32 to vector<1x256xf32>
    %332 = arith.mulf %96, %331 : vector<1x256xf32>
    %333 = arith.addf %329, %332 : vector<1x256xf32>
    %c9_148 = arith.constant 9 : index
    %c4_149 = arith.constant 4 : index
    %334 = memref.load %arg3[%c9_148, %c4_149] : memref<11x5xf32, #tpu.memory_space<smem>>
    %335 = vector.broadcast %334 : f32 to vector<1x256xf32>
    %336 = arith.mulf %120, %335 : vector<1x256xf32>
    %337 = arith.addf %333, %336 : vector<1x256xf32>
    %c9_150 = arith.constant 9 : index
    %338 = memref.load %arg4[%c9_150] : memref<11xf32, #tpu.memory_space<smem>>
    %339 = vector.broadcast %338 : f32 to vector<1x256xf32>
    %340 = arith.addf %337, %339 : vector<1x256xf32>
    %c10 = arith.constant 10 : index
    %c0_151 = arith.constant 0 : index
    %341 = memref.load %arg3[%c10, %c0_151] : memref<11x5xf32, #tpu.memory_space<smem>>
    %342 = vector.broadcast %341 : f32 to vector<1x256xf32>
    %343 = arith.mulf %24, %342 : vector<1x256xf32>
    %c10_152 = arith.constant 10 : index
    %c1_153 = arith.constant 1 : index
    %344 = memref.load %arg3[%c10_152, %c1_153] : memref<11x5xf32, #tpu.memory_space<smem>>
    %345 = vector.broadcast %344 : f32 to vector<1x256xf32>
    %346 = arith.mulf %48, %345 : vector<1x256xf32>
    %347 = arith.addf %343, %346 : vector<1x256xf32>
    %c10_154 = arith.constant 10 : index
    %c2_155 = arith.constant 2 : index
    %348 = memref.load %arg3[%c10_154, %c2_155] : memref<11x5xf32, #tpu.memory_space<smem>>
    %349 = vector.broadcast %348 : f32 to vector<1x256xf32>
    %350 = arith.mulf %72, %349 : vector<1x256xf32>
    %351 = arith.addf %347, %350 : vector<1x256xf32>
    %c10_156 = arith.constant 10 : index
    %c3_157 = arith.constant 3 : index
    %352 = memref.load %arg3[%c10_156, %c3_157] : memref<11x5xf32, #tpu.memory_space<smem>>
    %353 = vector.broadcast %352 : f32 to vector<1x256xf32>
    %354 = arith.mulf %96, %353 : vector<1x256xf32>
    %355 = arith.addf %351, %354 : vector<1x256xf32>
    %c10_158 = arith.constant 10 : index
    %c4_159 = arith.constant 4 : index
    %356 = memref.load %arg3[%c10_158, %c4_159] : memref<11x5xf32, #tpu.memory_space<smem>>
    %357 = vector.broadcast %356 : f32 to vector<1x256xf32>
    %358 = arith.mulf %120, %357 : vector<1x256xf32>
    %359 = arith.addf %355, %358 : vector<1x256xf32>
    %c10_160 = arith.constant 10 : index
    %360 = memref.load %arg4[%c10_160] : memref<11xf32, #tpu.memory_space<smem>>
    %361 = vector.broadcast %360 : f32 to vector<1x256xf32>
    %362 = arith.addf %359, %361 : vector<1x256xf32>
    %363 = tpu.concatenate %142, %164, %186, %208, %230, %252, %274, %296, %318, %340, %362 in 0 : vector<1x256xf32>, vector<1x256xf32>, vector<1x256xf32>, vector<1x256xf32>, vector<1x256xf32>, vector<1x256xf32>, vector<1x256xf32>, vector<1x256xf32>, vector<1x256xf32>, vector<1x256xf32>, vector<1x256xf32> -> vector<11x256xf32>
    %c0_161 = arith.constant 0 : index
    %c0_162 = arith.constant 0 : index
    %364 = vector.load %arg6[%c0_161, %c0_162] : memref<11x256xf32, #tpu.memory_space<vmem>>, vector<11x256xf32>
    tpu.vector_store %arg6[%c0_161, %c0_162], %363 {strides = array<i32>} : memref<11x256xf32, #tpu.memory_space<vmem>>, vector<11x256xf32>,
    return
  }
  func.func @transform_0(%arg0: i32) -> (i32, i32) {
    %c0_i32 = arith.constant 0 : i32
    %c0_i32_0 = arith.constant 0 : i32
    %c0_i32_1 = arith.constant 0 : i32
    return %c0_i32, %c0_i32_0 : i32, i32
  }
  func.func @transform_1(%arg0: i32) -> i32 {
    %c0_i32 = arith.constant 0 : i32
    %c0_i32_0 = arith.constant 0 : i32
    return %c0_i32 : i32
  }
  func.func @transform_2(%arg0: i32) -> (i32, i32) {
    %c0_i32 = arith.constant 0 : i32
    %c0_i32_0 = arith.constant 0 : i32
    %c0_i32_1 = arith.constant 0 : i32
    return %c0_i32, %c0_i32_0 : i32, i32
  }
  func.func @transform_3(%arg0: i32) -> i32 {
    %c0_i32 = arith.constant 0 : i32
    %c0_i32_0 = arith.constant 0 : i32
    return %c0_i32 : i32
  }
  func.func @transform_4(%arg0: i32) -> (i32, i32) {
    %c0_i32 = arith.constant 0 : i32
    %c0_i32_0 = arith.constant 0 : i32
    return %c0_i32, %arg0 : i32, i32
  }
  func.func @transform_5(%arg0: i32) -> (i32, i32) {
    %c0_i32 = arith.constant 0 : i32
    %c0_i32_0 = arith.constant 0 : i32
    return %c0_i32, %arg0 : i32, i32
  }
}

</mosaic_0001>

<llo_original>
// kernel: tpu_custom_call.1
$region0: #{tpu_custom_call.1}
  #allocation0 [shape = 'u32[]', space=smem, size = 0x4, offset = 0x4, fixed_abs, tag = 'smem constant byte address 0x4 - core index']
  #allocation1 [shape = 'u32[144,128]{1,0:T(1,128)}', space=vmem, size = 0x12000, scoped, tag = 'internal scratch']
  %s0 = inlined_call_operand.vmem [shape: f32[5,4], index: 0, kind: input, shape index: {}]
  %s1 = inlined_call_operand.vmem [shape: f32[5], index: 1, kind: input, shape index: {}]
  %s2 = inlined_call_operand.vmem [shape: f32[11,5], index: 2, kind: input, shape index: {}]
  %s3 = inlined_call_operand.vmem [shape: f32[11], index: 3, kind: input, shape index: {}]
  %s4 = inlined_call_operand.vmem [shape: f32[4,256], index: 4, kind: input, shape index: {}]
  %s5 = inlined_call_operand.hbm [shape: f32[11,256], index: 5, kind: output, shape index: {}]
  %s6 = sld [smem:[#allocation0]]
  $region46: #{tpu_custom_call.1} parent=0
    _
  %s8 = ssub.s32 1, %s6
  %s9 = scalar_select 0, %s8, %s6
  $region1: #{tpu_custom_call.1} parent=0
    #allocation2 [shape = 'u8[4096]{0}', space=smem, size = 0x1000, scoped, tag = 'input window, operand 0, single buffered']
    #allocation3 [shape = 's32[1]{0}', space=sflag, size = 0x4, scoped, tag = 'scoped memory for tpu_custom_call.1']
    #allocation4 [shape = 's32[1]{0}', space=sflag, size = 0x4, scoped, tag = 'scoped memory for tpu_custom_call.1']
    #allocation5 [shape = 'u8[512]{0}', space=smem, size = 0x200, scoped, tag = 'input window, operand 1, single buffered']
    #allocation6 [shape = 's32[1]{0}', space=sflag, size = 0x4, scoped, tag = 'scoped memory for tpu_custom_call.1']
    #allocation7 [shape = 'u8[8192]{0}', space=smem, size = 0x2000, scoped, tag = 'input window, operand 2, single buffered']
    #allocation8 [shape = 'u8[512]{0}', space=smem, size = 0x200, scoped, tag = 'input window, operand 3, single buffered']
    #allocation9 [shape = 's32[1]{0}', space=sflag, size = 0x4, scoped, tag = 'scoped memory for tpu_custom_call.1']
    #allocation10 [shape = 'u8[16384]{0}', space=vmem, size = 0x4000, scoped, tag = 'output window, operand 0, single buffered']
    %10 = vsyncpa [#allocation4], 0
    %11 = vsyncpa [#allocation6], 0
    %12 = vsyncpa [#allocation9], 0
    %13 = vsyncpa [#allocation3], 0
    // Predicated region
    $region2: #{tpu_custom_call.1} parent=1 // pred_check
      _
    $region3: #{tpu_custom_call.1} parent=1 // pred_check_branch
      %15 = sbr.rel (0) target = $region5
    $region4: #{tpu_custom_call.1} parent=1 // pred_region
      %s17 = ssub.s32 128, 128
      %18 = vsyncadd [#allocation4], %s17
      %s20 = sshll.u32 %s0, 4
      %s21 = int_to_ptr.vmem [resolvable:$true] %s20
      %23 = dma.vmem_to_smem %s21, 128, [#allocation2], [#allocation4]
    $region5: #{tpu_custom_call.1} parent=1 // pred_fallthru
      _
    // Predicated region
    $region6: #{tpu_custom_call.1} parent=1 // pred_check
      _
    $region7: #{tpu_custom_call.1} parent=1 // pred_check_branch
      %25 = sbr.rel (0) target = $region9
    $region8: #{tpu_custom_call.1} parent=1 // pred_region
      %s27 = ssub.s32 16, 16
      %28 = vsyncadd [#allocation6], %s27
      %s30 = sshll.u32 %s1, 4
      %s31 = int_to_ptr.vmem [resolvable:$true] %s30
      %33 = dma.vmem_to_smem %s31, 16, [#allocation5], [#allocation6]
    $region9: #{tpu_custom_call.1} parent=1 // pred_fallthru
      _
    // Predicated region
    $region10: #{tpu_custom_call.1} parent=1 // pred_check
      _
    $region11: #{tpu_custom_call.1} parent=1 // pred_check_branch
      %35 = sbr.rel (0) target = $region13
    $region12: #{tpu_custom_call.1} parent=1 // pred_region
      %s37 = ssub.s32 256, 256
      %38 = vsyncadd [#allocation6], %s37
      %s39 = sshll.u32 %s2, 4
      %s40 = int_to_ptr.vmem [resolvable:$true] %s39
      %45 = dma.vmem_to_smem %s40, 256, [#allocation7], [#allocation6], 128, 128, 8
    $region13: #{tpu_custom_call.1} parent=1 // pred_fallthru
      _
    // Predicated region
    $region14: #{tpu_custom_call.1} parent=1 // pred_check
      _
    $region15: #{tpu_custom_call.1} parent=1 // pred_check_branch
      %47 = sbr.rel (0) target = $region17
    $region16: #{tpu_custom_call.1} parent=1 // pred_region
      %s49 = ssub.s32 16, 16
      %50 = vsyncadd [#allocation9], %s49
      %s52 = sshll.u32 %s3, 4
      %s53 = int_to_ptr.vmem [resolvable:$true] %s52
      %55 = dma.vmem_to_smem %s53, 16, [#allocation8], [#allocation9]
    $region17: #{tpu_custom_call.1} parent=1 // pred_fallthru
      _
    // Predicated region
    $region18: #{tpu_custom_call.1} parent=1 // pred_check
      _
    $region19: #{tpu_custom_call.1} parent=1 // pred_check_branch
      %57 = sbr.rel (0) target = $region21
    $region20: #{tpu_custom_call.1} parent=1 // pred_region
      _
    $region21: #{tpu_custom_call.1} parent=1 // pred_fallthru
      _
    // Predicated region
    $region22: #{tpu_custom_call.1} parent=1 // pred_check
      _
    $region23: #{tpu_custom_call.1} parent=1 // pred_check_branch
      %59 = sbr.rel (0) target = $region25
    $region24: #{tpu_custom_call.1} parent=1 // pred_region
      %60 = dma.done [#allocation4], 128
    $region25: #{tpu_custom_call.1} parent=1 // pred_fallthru
      _
    // Predicated region
    $region26: #{tpu_custom_call.1} parent=1 // pred_check
      _
    $region27: #{tpu_custom_call.1} parent=1 // pred_check_branch
      %62 = sbr.rel (0) target = $region29
    $region28: #{tpu_custom_call.1} parent=1 // pred_region
      %63 = dma.done [#allocation6], 16
    $region29: #{tpu_custom_call.1} parent=1 // pred_fallthru
      _
    // Predicated region
    $region30: #{tpu_custom_call.1} parent=1 // pred_check
      _
    $region31: #{tpu_custom_call.1} parent=1 // pred_check_branch
      %65 = sbr.rel (0) target = $region33
    $region32: #{tpu_custom_call.1} parent=1 // pred_region
      %66 = dma.done [#allocation6], 256
    $region33: #{tpu_custom_call.1} parent=1 // pred_fallthru
      _
    // Predicated region
    $region34: #{tpu_custom_call.1} parent=1 // pred_check
      _
    $region35: #{tpu_custom_call.1} parent=1 // pred_check_branch
      %68 = sbr.rel (0) target = $region37
    $region36: #{tpu_custom_call.1} parent=1 // pred_region
      %69 = dma.done [#allocation9], 16
    $region37: #{tpu_custom_call.1} parent=1 // pred_fallthru
      _
    %70 = sfence
    %v71 = vld [vmem:[%s4] sm:$0xff]
    %s72 = sld [smem:[#allocation2]]
    %v73 = vstv %s72
    %v74 = vmul.f32 %v71, %v73
    %s75 = sld [smem:[#allocation2 + $0x1]]
    %v76 = vstv %s75
    %v77 = vmul.f32 %v71, %v76
    %v79 = vrot.slane %v77, 5
    %v80 = vrot.slane %v79, 4
    %v82 = vadd.f32 %v74, %v80
    %s83 = sld [smem:[#allocation2 + $0x2]]
    %v84 = vstv %s83
    %v85 = vmul.f32 %v71, %v84
    %v87 = vrot.slane %v85, 6
    %v88 = vrot.slane %v87, 4
    %v90 = vadd.f32 %v82, %v88
    %s91 = sld [smem:[#allocation2 + $0x3]]
    %v92 = vstv %s91
    %v93 = vmul.f32 %v71, %v92
    %v95 = vrot.slane %v93, 7
    %v96 = vrot.slane %v95, 4
    %v98 = vadd.f32 %v90, %v96
    %s99 = sld [smem:[#allocation5]]
    %v100 = vstv %s99
    %v101 = vadd.f32 %v98, %v100
    %v102 = vmax.f32 %v101, 0.0
    %s103 = sld [smem:[#allocation2 + $0x80]]
    %v104 = vstv %s103
    %v105 = vmul.f32 %v71, %v104
    %s106 = sld [smem:[#allocation2 + $0x81]]
    %v107 = vstv %s106
    %v108 = vmul.f32 %v71, %v107
    %v110 = vrot.slane %v108, 5
    %v111 = vrot.slane %v110, 4
    %v113 = vadd.f32 %v105, %v111
    %s114 = sld [smem:[#allocation2 + $0x82]]
    %v115 = vstv %s114
    %v116 = vmul.f32 %v71, %v115
    %v118 = vrot.slane %v116, 6
    %v119 = vrot.slane %v118, 4
    %v121 = vadd.f32 %v113, %v119
    %s122 = sld [smem:[#allocation2 + $0x83]]
    %v123 = vstv %s122
    %v124 = vmul.f32 %v71, %v123
    %v126 = vrot.slane %v124, 7
    %v127 = vrot.slane %v126, 4
    %v129 = vadd.f32 %v121, %v127
    %s130 = sld [smem:[#allocation5 + $0x1]]
    %v131 = vstv %s130
    %v132 = vadd.f32 %v129, %v131
    %v133 = vmax.f32 %v132, 0.0
    %s134 = sld [smem:[#allocation2 + $0x100]]
    %v135 = vstv %s134
    %v136 = vmul.f32 %v71, %v135
    %s137 = sld [smem:[#allocation2 + $0x101]]
    %v138 = vstv %s137
    %v139 = vmul.f32 %v71, %v138
    %v141 = vrot.slane %v139, 5
    %v142 = vrot.slane %v141, 4
    %v144 = vadd.f32 %v136, %v142
    %s145 = sld [smem:[#allocation2 + $0x102]]
    %v146 = vstv %s145
    %v147 = vmul.f32 %v71, %v146
    %v149 = vrot.slane %v147, 6
    %v150 = vrot.slane %v149, 4
    %v152 = vadd.f32 %v144, %v150
    %s153 = sld [smem:[#allocation2 + $0x103]]
    %v154 = vstv %s153
    %v155 = vmul.f32 %v71, %v154
    %v157 = vrot.slane %v155, 7
    %v158 = vrot.slane %v157, 4
    %v160 = vadd.f32 %v152, %v158
    %s161 = sld [smem:[#allocation5 + $0x2]]
    %v162 = vstv %s161
    %v163 = vadd.f32 %v160, %v162
    %v164 = vmax.f32 %v163, 0.0
    %s165 = sld [smem:[#allocation2 + $0x180]]
    %v166 = vstv %s165
    %v167 = vmul.f32 %v71, %v166
    %s168 = sld [smem:[#allocation2 + $0x181]]
    %v169 = vstv %s168
    %v170 = vmul.f32 %v71, %v169
    %v172 = vrot.slane %v170, 5
    %v173 = vrot.slane %v172, 4
    %v175 = vadd.f32 %v167, %v173
    %s176 = sld [smem:[#allocation2 + $0x182]]
    %v177 = vstv %s176
    %v178 = vmul.f32 %v71, %v177
    %v180 = vrot.slane %v178, 6
    %v181 = vrot.slane %v180, 4
    %v183 = vadd.f32 %v175, %v181
    %s184 = sld [smem:[#allocation2 + $0x183]]
    %v185 = vstv %s184
    %v186 = vmul.f32 %v71, %v185
    %v188 = vrot.slane %v186, 7
    %v189 = vrot.slane %v188, 4
    %v191 = vadd.f32 %v183, %v189
    %s192 = sld [smem:[#allocation5 + $0x3]]
    %v193 = vstv %s192
    %v194 = vadd.f32 %v191, %v193
    %v195 = vmax.f32 %v194, 0.0
    %s196 = sld [smem:[#allocation2 + $0x200]]
    %v197 = vstv %s196
    %v198 = vmul.f32 %v71, %v197
    %s199 = sld [smem:[#allocation2 + $0x201]]
    %v200 = vstv %s199
    %v201 = vmul.f32 %v71, %v200
    %v203 = vrot.slane %v201, 5
    %v204 = vrot.slane %v203, 4
    %v206 = vadd.f32 %v198, %v204
    %s207 = sld [smem:[#allocation2 + $0x202]]
    %v208 = vstv %s207
    %v209 = vmul.f32 %v71, %v208
    %v211 = vrot.slane %v209, 6
    %v212 = vrot.slane %v211, 4
    %v214 = vadd.f32 %v206, %v212
    %s215 = sld [smem:[#allocation2 + $0x203]]
    %v216 = vstv %s215
    %v217 = vmul.f32 %v71, %v216
    %v219 = vrot.slane %v217, 7
    %v220 = vrot.slane %v219, 4
    %v222 = vadd.f32 %v214, %v220
    %s223 = sld [smem:[#allocation5 + $0x4]]
    %v224 = vstv %s223
    %v225 = vadd.f32 %v222, %v224
    %v226 = vmax.f32 %v225, 0.0
    %s227 = sld [smem:[#allocation7]]
    %v228 = vstv %s227
    %v229 = vmul.f32 %v102, %v228
    %s230 = sld [smem:[#allocation7 + $0x1]]
    %v231 = vstv %s230
    %v232 = vmul.f32 %v133, %v231
    %v233 = vadd.f32 %v229, %v232
    %s234 = sld [smem:[#allocation7 + $0x2]]
    %v235 = vstv %s234
    %v236 = vmul.f32 %v164, %v235
    %v237 = vadd.f32 %v233, %v236
    %s238 = sld [smem:[#allocation7 + $0x3]]
    %v239 = vstv %s238
    %v240 = vmul.f32 %v195, %v239
    %v241 = vadd.f32 %v237, %v240
    %s242 = sld [smem:[#allocation7 + $0x4]]
    %v243 = vstv %s242
    %v244 = vmul.f32 %v226, %v243
    %v245 = vadd.f32 %v241, %v244
    %s246 = sld [smem:[#allocation8]]
    %v247 = vstv %s246
    %v248 = vadd.f32 %v245, %v247
    %s249 = sld [smem:[#allocation7 + $0x80]]
    %v250 = vstv %s249
    %v251 = vmul.f32 %v102, %v250
    %s252 = sld [smem:[#allocation7 + $0x81]]
    %v253 = vstv %s252
    %v254 = vmul.f32 %v133, %v253
    %v255 = vadd.f32 %v251, %v254
    %s256 = sld [smem:[#allocation7 + $0x82]]
    %v257 = vstv %s256
    %v258 = vmul.f32 %v164, %v257
    %v259 = vadd.f32 %v255, %v258
    %s260 = sld [smem:[#allocation7 + $0x83]]
    %v261 = vstv %s260
    %v262 = vmul.f32 %v195, %v261
    %v263 = vadd.f32 %v259, %v262
    %s264 = sld [smem:[#allocation7 + $0x84]]
    %v265 = vstv %s264
    %v266 = vmul.f32 %v226, %v265
    %v267 = vadd.f32 %v263, %v266
    %s268 = sld [smem:[#allocation8 + $0x1]]
    %v269 = vstv %s268
    %v270 = vadd.f32 %v267, %v269
    %s271 = sld [smem:[#allocation7 + $0x100]]
    %v272 = vstv %s271
    %v273 = vmul.f32 %v102, %v272
    %s274 = sld [smem:[#allocation7 + $0x101]]
    %v275 = vstv %s274
    %v276 = vmul.f32 %v133, %v275
    %v277 = vadd.f32 %v273, %v276
    %s278 = sld [smem:[#allocation7 + $0x102]]
    %v279 = vstv %s278
    %v280 = vmul.f32 %v164, %v279
    %v281 = vadd.f32 %v277, %v280
    %s282 = sld [smem:[#allocation7 + $0x103]]
    %v283 = vstv %s282
    %v284 = vmul.f32 %v195, %v283
    %v285 = vadd.f32 %v281, %v284
    %s286 = sld [smem:[#allocation7 + $0x104]]
    %v287 = vstv %s286
    %v288 = vmul.f32 %v226, %v287
    %v289 = vadd.f32 %v285, %v288
    %s290 = sld [smem:[#allocation8 + $0x2]]
    %v291 = vstv %s290
    %v292 = vadd.f32 %v289, %v291
    %s293 = sld [smem:[#allocation7 + $0x180]]
    %v294 = vstv %s293
    %v295 = vmul.f32 %v102, %v294
    %s296 = sld [smem:[#allocation7 + $0x181]]
    %v297 = vstv %s296
    %v298 = vmul.f32 %v133, %v297
    %v299 = vadd.f32 %v295, %v298
    %s300 = sld [smem:[#allocation7 + $0x182]]
    %v301 = vstv %s300
    %v302 = vmul.f32 %v164, %v301
    %v303 = vadd.f32 %v299, %v302
    %s304 = sld [smem:[#allocation7 + $0x183]]
    %v305 = vstv %s304
    %v306 = vmul.f32 %v195, %v305
    %v307 = vadd.f32 %v303, %v306
    %s308 = sld [smem:[#allocation7 + $0x184]]
    %v309 = vstv %s308
    %v310 = vmul.f32 %v226, %v309
    %v311 = vadd.f32 %v307, %v310
    %s312 = sld [smem:[#allocation8 + $0x3]]
    %v313 = vstv %s312
    %v314 = vadd.f32 %v311, %v313
    %s315 = sld [smem:[#allocation7 + $0x200]]
    %v316 = vstv %s315
    %v317 = vmul.f32 %v102, %v316
    %s318 = sld [smem:[#allocation7 + $0x201]]
    %v319 = vstv %s318
    %v320 = vmul.f32 %v133, %v319
    %v321 = vadd.f32 %v317, %v320
    %s322 = sld [smem:[#allocation7 + $0x202]]
    %v323 = vstv %s322
    %v324 = vmul.f32 %v164, %v323
    %v325 = vadd.f32 %v321, %v324
    %s326 = sld [smem:[#allocation7 + $0x203]]
    %v327 = vstv %s326
    %v328 = vmul.f32 %v195, %v327
    %v329 = vadd.f32 %v325, %v328
    %s330 = sld [smem:[#allocation7 + $0x204]]
    %v331 = vstv %s330
    %v332 = vmul.f32 %v226, %v331
    %v333 = vadd.f32 %v329, %v332
    %s334 = sld [smem:[#allocation8 + $0x4]]
    %v335 = vstv %s334
    %v336 = vadd.f32 %v333, %v335
    %s337 = sld [smem:[#allocation7 + $0x280]]
    %v338 = vstv %s337
    %v339 = vmul.f32 %v102, %v338
    %s340 = sld [smem:[#allocation7 + $0x281]]
    %v341 = vstv %s340
    %v342 = vmul.f32 %v133, %v341
    %v343 = vadd.f32 %v339, %v342
    %s344 = sld [smem:[#allocation7 + $0x282]]
    %v345 = vstv %s344
    %v346 = vmul.f32 %v164, %v345
    %v347 = vadd.f32 %v343, %v346
    %s348 = sld [smem:[#allocation7 + $0x283]]
    %v349 = vstv %s348
    %v350 = vmul.f32 %v195, %v349
    %v351 = vadd.f32 %v347, %v350
    %s352 = sld [smem:[#allocation7 + $0x284]]
    %v353 = vstv %s352
    %v354 = vmul.f32 %v226, %v353
    %v355 = vadd.f32 %v351, %v354
    %s356 = sld [smem:[#allocation8 + $0x5]]
    %v357 = vstv %s356
    %v358 = vadd.f32 %v355, %v357
    %s359 = sld [smem:[#allocation7 + $0x300]]
    %v360 = vstv %s359
    %v361 = vmul.f32 %v102, %v360
    %s362 = sld [smem:[#allocation7 + $0x301]]
    %v363 = vstv %s362
    %v364 = vmul.f32 %v133, %v363
    %v365 = vadd.f32 %v361, %v364
    %s366 = sld [smem:[#allocation7 + $0x302]]
    %v367 = vstv %s366
    %v368 = vmul.f32 %v164, %v367
    %v369 = vadd.f32 %v365, %v368
    %s370 = sld [smem:[#allocation7 + $0x303]]
    %v371 = vstv %s370
    %v372 = vmul.f32 %v195, %v371
    %v373 = vadd.f32 %v369, %v372
    %s374 = sld [smem:[#allocation7 + $0x304]]
    %v375 = vstv %s374
    %v376 = vmul.f32 %v226, %v375
    %v377 = vadd.f32 %v373, %v376
    %s378 = sld [smem:[#allocation8 + $0x6]]
    %v379 = vstv %s378
    %v380 = vadd.f32 %v377, %v379
    %s381 = sld [smem:[#allocation7 + $0x380]]
    %v382 = vstv %s381
    %v383 = vmul.f32 %v102, %v382
    %s384 = sld [smem:[#allocation7 + $0x381]]
    %v385 = vstv %s384
    %v386 = vmul.f32 %v133, %v385
    %v387 = vadd.f32 %v383, %v386
    %s388 = sld [smem:[#allocation7 + $0x382]]
    %v389 = vstv %s388
    %v390 = vmul.f32 %v164, %v389
    %v391 = vadd.f32 %v387, %v390
    %s392 = sld [smem:[#allocation7 + $0x383]]
    %v393 = vstv %s392
    %v394 = vmul.f32 %v195, %v393
    %v395 = vadd.f32 %v391, %v394
    %s396 = sld [smem:[#allocation7 + $0x384]]
    %v397 = vstv %s396
    %v398 = vmul.f32 %v226, %v397
    %v399 = vadd.f32 %v395, %v398
    %s400 = sld [smem:[#allocation8 + $0x7]]
    %v401 = vstv %s400
    %v402 = vadd.f32 %v399, %v401
    %s403 = sld [smem:[#allocation7 + $0x400]]
    %v404 = vstv %s403
    %v405 = vmul.f32 %v102, %v404
    %s406 = sld [smem:[#allocation7 + $0x401]]
    %v407 = vstv %s406
    %v408 = vmul.f32 %v133, %v407
    %v409 = vadd.f32 %v405, %v408
    %s410 = sld [smem:[#allocation7 + $0x402]]
    %v411 = vstv %s410
    %v412 = vmul.f32 %v164, %v411
    %v413 = vadd.f32 %v409, %v412
    %s414 = sld [smem:[#allocation7 + $0x403]]
    %v415 = vstv %s414
    %v416 = vmul.f32 %v195, %v415
    %v417 = vadd.f32 %v413, %v416
    %s418 = sld [smem:[#allocation7 + $0x404]]
    %v419 = vstv %s418
    %v420 = vmul.f32 %v226, %v419
    %v421 = vadd.f32 %v417, %v420
    %s422 = sld [smem:[#allocation8 + $0x8]]
    %v423 = vstv %s422
    %v424 = vadd.f32 %v421, %v423
    %s425 = sld [smem:[#allocation7 + $0x480]]
    %v426 = vstv %s425
    %v427 = vmul.f32 %v102, %v426
    %s428 = sld [smem:[#allocation7 + $0x481]]
    %v429 = vstv %s428
    %v430 = vmul.f32 %v133, %v429
    %v431 = vadd.f32 %v427, %v430
    %s432 = sld [smem:[#allocation7 + $0x482]]
    %v433 = vstv %s432
    %v434 = vmul.f32 %v164, %v433
    %v435 = vadd.f32 %v431, %v434
    %s436 = sld [smem:[#allocation7 + $0x483]]
    %v437 = vstv %s436
    %v438 = vmul.f32 %v195, %v437
    %v439 = vadd.f32 %v435, %v438
    %s440 = sld [smem:[#allocation7 + $0x484]]
    %v441 = vstv %s440
    %v442 = vmul.f32 %v226, %v441
    %v443 = vadd.f32 %v439, %v442
    %s444 = sld [smem:[#allocation8 + $0x9]]
    %v445 = vstv %s444
    %v446 = vadd.f32 %v443, %v445
    %s447 = sld [smem:[#allocation7 + $0x500]]
    %v448 = vstv %s447
    %v449 = vmul.f32 %v102, %v448
    %s450 = sld [smem:[#allocation7 + $0x501]]
    %v451 = vstv %s450
    %v452 = vmul.f32 %v133, %v451
    %v453 = vadd.f32 %v449, %v452
    %s454 = sld [smem:[#allocation7 + $0x502]]
    %v455 = vstv %s454
    %v456 = vmul.f32 %v164, %v455
    %v457 = vadd.f32 %v453, %v456
    %s458 = sld [smem:[#allocation7 + $0x503]]
    %v459 = vstv %s458
    %v460 = vmul.f32 %v195, %v459
    %v461 = vadd.f32 %v457, %v460
    %s462 = sld [smem:[#allocation7 + $0x504]]
    %v463 = vstv %s462
    %v464 = vmul.f32 %v226, %v463
    %v465 = vadd.f32 %v461, %v464
    %s466 = sld [smem:[#allocation8 + $0xa]]
    %v467 = vstv %s466
    %v468 = vadd.f32 %v465, %v467
    %v470 = vlaneseq
    %v471 = vshrl.u32 %v470, 7
    %v472 = vsub.s32 0, %v471
    %v473 = vrot.slane %v248, %v472
    %v474 = vlaneseq
    %v475 = vshrl.u32 %v474, 7
    %v476 = vsub.s32 4, %v475
    %v477 = vrot.slane %v248, %v476
    %v481 = vlaneseq
    %v482 = vshrl.u32 %v481, 7
    %v483 = vsub.s32 0, %v482
    %v484 = vrot.slane %v270, %v483
    %v485 = vlaneseq
    %v486 = vshrl.u32 %v485, 7
    %v487 = vsub.s32 4, %v486
    %v488 = vrot.slane %v270, %v487
    %v492 = vlaneseq
    %v493 = vshrl.u32 %v492, 7
    %v494 = vsub.s32 0, %v493
    %v495 = vrot.slane %v292, %v494
    %v496 = vlaneseq
    %v497 = vshrl.u32 %v496, 7
    %v498 = vsub.s32 4, %v497
    %v499 = vrot.slane %v292, %v498
    %v503 = vlaneseq
    %v504 = vshrl.u32 %v503, 7
    %v505 = vsub.s32 0, %v504
    %v506 = vrot.slane %v314, %v505
    %v507 = vlaneseq
    %v508 = vshrl.u32 %v507, 7
    %v509 = vsub.s32 4, %v508
    %v510 = vrot.slane %v314, %v509
    %v514 = vlaneseq
    %v515 = vshrl.u32 %v514, 7
    %v516 = vsub.s32 0, %v515
    %v517 = vrot.slane %v336, %v516
    %v518 = vlaneseq
    %v519 = vshrl.u32 %v518, 7
    %v520 = vsub.s32 4, %v519
    %v521 = vrot.slane %v336, %v520
    %v525 = vlaneseq
    %v526 = vshrl.u32 %v525, 7
    %v527 = vsub.s32 0, %v526
    %v528 = vrot.slane %v358, %v527
    %v529 = vlaneseq
    %v530 = vshrl.u32 %v529, 7
    %v531 = vsub.s32 4, %v530
    %v532 = vrot.slane %v358, %v531
    %v536 = vlaneseq
    %v537 = vshrl.u32 %v536, 7
    %v538 = vsub.s32 0, %v537
    %v539 = vrot.slane %v380, %v538
    %v540 = vlaneseq
    %v541 = vshrl.u32 %v540, 7
    %v542 = vsub.s32 4, %v541
    %v543 = vrot.slane %v380, %v542
    %v547 = vlaneseq
    %v548 = vshrl.u32 %v547, 7
    %v549 = vsub.s32 0, %v548
    %v550 = vrot.slane %v402, %v549
    %v551 = vlaneseq
    %v552 = vshrl.u32 %v551, 7
    %v553 = vsub.s32 4, %v552
    %v554 = vrot.slane %v402, %v553
    %v558 = vlaneseq
    %v559 = vshrl.u32 %v558, 7
    %v560 = vsub.s32 0, %v559
    %v561 = vrot.slane %v424, %v560
    %v562 = vlaneseq
    %v563 = vshrl.u32 %v562, 7
    %v564 = vsub.s32 4, %v563
    %v565 = vrot.slane %v424, %v564
    %v569 = vlaneseq
    %v570 = vshrl.u32 %v569, 7
    %v571 = vsub.s32 0, %v570
    %v572 = vrot.slane %v446, %v571
    %v573 = vlaneseq
    %v574 = vshrl.u32 %v573, 7
    %v575 = vsub.s32 4, %v574
    %v576 = vrot.slane %v446, %v575
    %v580 = vlaneseq
    %v581 = vshrl.u32 %v580, 7
    %v582 = vsub.s32 0, %v581
    %v583 = vrot.slane %v468, %v582
    %v584 = vlaneseq
    %v585 = vshrl.u32 %v584, 7
    %v586 = vsub.s32 4, %v585
    %v587 = vrot.slane %v468, %v586
    %vm590 = vcmask 1040384
    %v591 = vsel %vm590, %v473, %v484
    %v592 = vsel %vm590, %v477, %v488
    %vm593 = vcmask 1041408
    %v594 = vsel %vm593, %v591, %v495
    %v595 = vsel %vm593, %v592, %v499
    %vm596 = vcmask 1042432
    %v597 = vsel %vm596, %v594, %v506
    %v598 = vsel %vm596, %v595, %v510
    %vm599 = vcmask 1043456
    %v600 = vsel %vm599, %v597, %v517
    %v601 = vsel %vm599, %v598, %v521
    %vm602 = vcmask 1044480
    %v603 = vsel %vm602, %v600, %v528
    %v604 = vsel %vm602, %v601, %v532
    %vm605 = vcmask 1045504
    %v606 = vsel %vm605, %v603, %v539
    %v607 = vsel %vm605, %v604, %v543
    %vm608 = vcmask 1046528
    %v609 = vsel %vm608, %v606, %v550
    %v610 = vsel %vm608, %v607, %v554
    %v611 = vsel %vm590, %v561, %v572
    %v612 = vsel %vm590, %v565, %v576
    %v613 = vsel %vm593, %v611, %v583
    %v614 = vsel %vm593, %v612, %v587
    %615 = vst [vmem:[#allocation10] sm:$0xff] %v609
    %616 = vst [vmem:[#allocation10 + $0x8] sm:$0xff] %v610
    %617 = vst [vmem:[#allocation10 + $0x10] sm:$0x7] %v613
    %618 = vst [vmem:[#allocation10 + $0x18] sm:$0x7] %v614
    // Predicated region
    $region38: #{tpu_custom_call.1} parent=1 // pred_check
      _
    $region39: #{tpu_custom_call.1} parent=1 // pred_check_branch
      %620 = sbr.rel (0) target = $region41
    $region40: #{tpu_custom_call.1} parent=1 // pred_region
      %s622 = ssub.s32 512, 512
      %623 = vsyncadd [#allocation3], %s622
      %s624 = sshll.u32 [#allocation10], 4
      %s625 = int_to_ptr.vmem [resolvable:$true] %s624
      %630 = dma.vmem_to_hbm [thread:$0]  %s625, 512, %s5, [#allocation3], 256, 256, 16
    $region41: #{tpu_custom_call.1} parent=1 // pred_fallthru
      _
    // Predicated region
    $region42: #{tpu_custom_call.1} parent=1 // pred_check
      _
    $region43: #{tpu_custom_call.1} parent=1 // pred_check_branch
      %632 = sbr.rel (0) target = $region45
    $region44: #{tpu_custom_call.1} parent=1 // pred_region
      %633 = dma.done [#allocation3], 512
    $region45: #{tpu_custom_call.1} parent=1 // pred_fallthru
      _
    %634 = vsyncpa [#allocation3], 1
    %635 = vsyncpa [#allocation4], 1
    %636 = vsyncpa [#allocation6], 1
    %637 = vsyncpa [#allocation9], 1

</llo_original>
